<compile_context>
chip_gen: v6e
topology: v6e:2x2x1
jax: 0.10.0
libtpu: 0.0.40
codegen_flags: <defaults>
</compile_context>

<pallas_src>
import functools

import jax
import jax.numpy as jnp
from jax.experimental import pallas as pl
from jax.experimental.pallas import tpu as pltpu

# Module constants (from the PyTorch VAE).
LOG_STD_MAX = 1.0
LOG_STD_MIN = 0.0
MEAN_MIN = -2.0
MEAN_MAX = 2.0
NEG_SLOPE = 0.01          # nn.LeakyReLU default negative_slope
NUM_LAYERS = 9            # encoder(3) + mean head + log_std head + decoder(4)
LANE = 128


def _round_up(v, m):
    return (v + m - 1) // m * m


def _leaky_relu(v):
    return jnp.where(v > 0, v, NEG_SLOPE * v)


# ----------------------------------------------------------------------------- kernel
def vae_kernel(xe_ref, w_ref, b_ref, out_ref):
    """One batch tile of the full VAE forward.

    xe_ref : (TB, 2P)   [ x (padded to P lanes) | eps (padded to P lanes) ]
    w_ref  : (9, P, P)  zero-padded weights, layer order:
                        enc1, enc2, enc3, mean, log_std, dec1, dec2, dec3, dec4
    b_ref  : (9, 1, P)  zero-padded bias rows
    out_ref: (TB, 4P)   [ out | z | mean | std ], each segment P lanes wide
    """
    P = w_ref.shape[-1]

    def lin(h, layer):
        return (
            jnp.dot(h, w_ref[layer], preferred_element_type=jnp.float32)
            + b_ref[layer]
        )

    x = xe_ref[:, :P]
    eps = xe_ref[:, P:]

    # ---- encoder: 3x (Linear + LeakyReLU) ----
    h = _leaky_relu(lin(x, 0))
    h = _leaky_relu(lin(h, 1))
    h = _leaky_relu(lin(h, 2))

    # ---- heads (share the single packed weight slab; both lane-aligned at 0) ----
    mean = jnp.tanh(lin(h, 3))
    log_std = jnp.tanh(lin(h, 4))
    log_std = LOG_STD_MIN + 0.5 * (LOG_STD_MAX - LOG_STD_MIN) * (log_std + 1.0)
    mean = MEAN_MIN + 0.5 * (MEAN_MAX - MEAN_MIN) * (mean + 1.0)
    std = jnp.exp(log_std)

    # ---- reparameterization: z = mean + std * eps ----
    z = mean + std * eps

    # ---- decoder: 3x (Linear + LeakyReLU) + final Linear ----
    g = _leaky_relu(lin(z, 5))
    g = _leaky_relu(lin(g, 6))
    g = _leaky_relu(lin(g, 7))
    y = lin(g, 8)

    # Lane-dense packed output: each segment is 128-lane aligned and P wide.
    out_ref[:, 0 * P:1 * P] = y
    out_ref[:, 1 * P:2 * P] = z
    out_ref[:, 2 * P:3 * P] = mean
    out_ref[:, 3 * P:4 * P] = std


# ----------------------------------------------------------------------------- params
def init_params(key, input_dim, h1, h2, h3, latent_dim, out_dim):
    """Per-layer (W, b) init mimicking PyTorch Linear U[-1/sqrt(fan_in), 1/sqrt(fan_in)].

    Weights are stored (in_features, out_features) so the kernel computes x @ W + b.
    """
    layer_dims = [
        (input_dim, h1), (h1, h2), (h2, h3),                  # encoder
        (h3, latent_dim), (h3, latent_dim),                   # mean / log_std heads
        (latent_dim, h3), (h3, h2), (h2, h3), (h3, out_dim),  # decoder
    ]
    keys = jax.random.split(key, 2 * len(layer_dims))
    weights, biases = [], []
    for i, (di, do) in enumerate(layer_dims):
        bound = 1.0 / (float(di) ** 0.5)
        w = jax.random.uniform(keys[2 * i], (di, do), jnp.float32, -bound, bound)
        b = jax.random.uniform(keys[2 * i + 1], (do,), jnp.float32, -bound, bound)
        weights.append(w)
        biases.append(b)
    return weights, biases


def pack_params(weights, biases):
    """Pack all layers into two zero-padded slabs (done once, host/XLA side)."""
    assert len(weights) == NUM_LAYERS and len(biases) == NUM_LAYERS
    max_dim = max(max(w.shape) for w in weights)
    P = max(LANE, _round_up(max_dim, LANE))
    w_packed = jnp.zeros((NUM_LAYERS, P, P), jnp.float32)
    b_packed = jnp.zeros((NUM_LAYERS, 1, P), jnp.float32)
    for l, (w, b) in enumerate(zip(weights, biases)):
        di, do = w.shape
        w_packed = w_packed.at[l, :di, :do].set(w.astype(jnp.float32))
        b_packed = b_packed.at[l, 0, :do].set(b.astype(jnp.float32))
    return w_packed, b_packed


# ----------------------------------------------------------------------------- wrapper
@functools.partial(jax.jit, static_argnames=("input_dim", "latent_dim", "out_dim"))
def vae_forward(x, eps, w_packed, b_packed, *, input_dim, latent_dim, out_dim):
    B = x.shape[0]
    n_layers, P, _ = w_packed.shape
    assert n_layers == NUM_LAYERS

    # Batch tile: multiple of 8 sublanes, capped at 256 rows so the
    # double-buffered activation slabs stay tiny even on v7x (64 MiB VMEM/TC)
    # while amortizing the ~0.35us per-grid-step overhead.
    tb = min(256, _round_up(B, 8))
    b_pad = _round_up(B, tb)
    num_tiles = b_pad // tb

    # Single lane-dense input slab: [ x | eps ], zero padded.
    xe = jnp.zeros((b_pad, 2 * P), jnp.float32)
    xe = xe.at[:B, :input_dim].set(x.astype(jnp.float32))
    xe = xe.at[:B, P:P + latent_dim].set(eps.astype(jnp.float32))

    bytes_accessed = 4 * (xe.size + w_packed.size + b_packed.size + b_pad * 4 * P)
    cost = pl.CostEstimate(
        flops=2 * b_pad * NUM_LAYERS * P * P,
        transcendentals=3 * b_pad * P,        # 2 tanh tiles + 1 exp tile per row
        bytes_accessed=bytes_accessed,
    )

    packed = pl.pallas_call(
        vae_kernel,
        out_shape=jax.ShapeDtypeStruct((b_pad, 4 * P), jnp.float32),
        grid=(num_tiles,),
        in_specs=[
            pl.BlockSpec((tb, 2 * P), lambda i: (i, 0)),            # x|eps tile
            pl.BlockSpec((NUM_LAYERS, P, P), lambda i: (0, 0, 0)),  # weights: VMEM-resident
            pl.BlockSpec((NUM_LAYERS, 1, P), lambda i: (0, 0, 0)),  # biases:  VMEM-resident
        ],
        out_specs=pl.BlockSpec((tb, 4 * P), lambda i: (i, 0)),
        compiler_params=pltpu.CompilerParams(
            dimension_semantics=("parallel",),   # shard batch tiles across TCs (v7x)
        ),
        cost_estimate=cost,
    )(xe, w_packed, b_packed)

    out = packed[:B, 0 * P:0 * P + out_dim]
    z = packed[:B, 1 * P:1 * P + latent_dim]
    mean = packed[:B, 2 * P:2 * P + latent_dim]
    std = packed[:B, 3 * P:3 * P + latent_dim]
    return out, z, {"mean": mean, "std": std}


# ----------------------------------------------------------------------------- reference
def vae_reference(x, eps, weights, biases):
    """Pure-JAX (XLA) reference of the same forward pass, float32."""
    def lin(h, l):
        return h @ weights[l] + biases[l]

    h = _leaky_relu(lin(x, 0))
    h = _leaky_relu(lin(h, 1))
    h = _leaky_relu(lin(h, 2))
    mean = jnp.tanh(lin(h, 3))
    log_std = jnp.tanh(lin(h, 4))
    log_std = LOG_STD_MIN + 0.5 * (LOG_STD_MAX - LOG_STD_MIN) * (log_std + 1.0)
    mean = MEAN_MIN + 0.5 * (MEAN_MAX - MEAN_MIN) * (mean + 1.0)
    std = jnp.exp(log_std)
    z = mean + std * eps
    g = _leaky_relu(lin(z, 5))
    g = _leaky_relu(lin(g, 6))
    g = _leaky_relu(lin(g, 7))
    out = lin(g, 8)
    return out, z, mean, std


# ----------------------------------------------------------------------------- main
if __name__ == "__main__":
    B = 8
    input_dim = 16
    hidden_dim_1, hidden_dim_2, hidden_dim_3 = 32, 64, 32
    latent_dim = 8
    out_dim = 16

    key = jax.random.PRNGKey(0)
    k_x, k_eps, k_par = jax.random.split(key, 3)

    x = jax.random.normal(k_x, (B, input_dim), dtype=jnp.float32)
    # epsilon for the reparameterization trick (torch.randn_like(mean))
    eps = jax.random.normal(k_eps, (B, latent_dim), dtype=jnp.float32)

    weights, biases = init_params(
        k_par, input_dim, hidden_dim_1, hidden_dim_2, hidden_dim_3, latent_dim, out_dim
    )
    w_packed, b_packed = pack_params(weights, biases)

    out, z, stats = vae_forward(
        x, eps, w_packed, b_packed,
        input_dim=input_dim, latent_dim=latent_dim, out_dim=out_dim,
    )
    jax.block_until_ready((out, z, stats["mean"], stats["std"]))

    assert out.shape == (B, out_dim)
    assert z.shape == (B, latent_dim)
    assert stats["mean"].shape == (B, latent_dim)
    assert stats["std"].shape == (B, latent_dim)

    # Correctness check vs. a pure-JAX reference.  Loose tolerance because the
    # default f32 matmul precision may differ slightly between the Pallas MXU
    # lowering and XLA's dot.
    r_out, r_z, r_mean, r_std = vae_reference(x, eps, weights, biases)
    for name, got, want in (
        ("out", out, r_out),
        ("z", z, r_z),
        ("mean", stats["mean"], r_mean),
        ("std", stats["std"], r_std),
    ):
        err = float(jnp.max(jnp.abs(got - want)))
        assert err < 2e-2, f"{name} mismatch, max abs err = {err}"

    print("KERNEL_OK")
</pallas_src>

<mosaic_0001>
module attributes {stable_mosaic.version = 11 : i64} {
  func.func @vae_kernel(%arg0: i32, %arg1: memref<8x256xf32, #tpu.memory_space<vmem>>, %arg2: memref<9x128x128xf32, #tpu.memory_space<vmem>>, %arg3: memref<9x1x128xf32, #tpu.memory_space<vmem>>, %arg4: memref<8x512xf32, #tpu.memory_space<vmem>>) attributes {dimension_semantics = [#tpu.dimension_semantics<parallel>], iteration_bounds = array<i64: 1>, scalar_prefetch = 0 : i64, scratch_operands = 0 : i64, tpu.core_type = #tpu.core_type<tc>, window_params = [{transform_indices = @transform_0, window_bounds = array<i64: 8, 256>}, {pipeline_mode = #tpu.pipeline_mode<synchronous>, transform_indices = @transform_1, window_bounds = array<i64: 9, 128, 128>}, {pipeline_mode = #tpu.pipeline_mode<synchronous>, transform_indices = @transform_2, window_bounds = array<i64: 9, 1, 128>}, {transform_indices = @transform_3, window_bounds = array<i64: 8, 512>}]} {
    %c0 = arith.constant 0 : index
    %c0_0 = arith.constant 0 : index
    %0 = vector.load %arg1[%c0, %c0_0] : memref<8x256xf32, #tpu.memory_space<vmem>>, vector<8x128xf32>
    %c0_1 = arith.constant 0 : index
    %c128 = arith.constant 128 : index
    %1 = vector.load %arg1[%c0_1, %c128] : memref<8x256xf32, #tpu.memory_space<vmem>>, vector<8x128xf32>
    %c0_2 = arith.constant 0 : index
    %c0_3 = arith.constant 0 : index
    %c0_4 = arith.constant 0 : index
    %2 = vector.load %arg2[%c0_2, %c0_3, %c0_4] : memref<9x128x128xf32, #tpu.memory_space<vmem>>, vector<1x128x128xf32>
    %3 = vector.shape_cast %2 : vector<1x128x128xf32> to vector<128x128xf32>
    %cst = arith.constant dense<0.000000e+00> : vector<8x128xf32>
    %4 = tpu.matmul %0, %3, %cst {dimension_numbers = #tpu.dot_dimension_numbers<[1], [0], [0], [1], [0, 0, 1, 1], [], []>} : vector<8x128xf32>, vector<128x128xf32>, vector<8x128xf32> -> vector<8x128xf32>
    %c0_5 = arith.constant 0 : index
    %c0_6 = arith.constant 0 : index
    %c0_7 = arith.constant 0 : index
    %5 = vector.load %arg3[%c0_5, %c0_6, %c0_7] : memref<9x1x128xf32, #tpu.memory_space<vmem>>, vector<1x1x128xf32>
    %6 = vector.shape_cast %5 : vector<1x1x128xf32> to vector<1x128xf32>
    %7 = vector.broadcast %6 : vector<1x128xf32> to vector<8x128xf32>
    %8 = arith.addf %4, %7 : vector<8x128xf32>
    %cst_8 = arith.constant 0.000000e+00 : f32
    %9 = vector.broadcast %cst_8 : f32 to vector<8x128xf32>
    %10 = arith.cmpf ogt, %8, %9 : vector<8x128xf32>
    %cst_9 = arith.constant 0.00999999977 : f32
    %11 = vector.broadcast %cst_9 : f32 to vector<8x128xf32>
    %12 = arith.mulf %11, %8 : vector<8x128xf32>
    %13 = arith.select %10, %8, %12 : vector<8x128xi1>, vector<8x128xf32>
    %c1 = arith.constant 1 : index
    %c0_10 = arith.constant 0 : index
    %c0_11 = arith.constant 0 : index
    %14 = vector.load %arg2[%c1, %c0_10, %c0_11] : memref<9x128x128xf32, #tpu.memory_space<vmem>>, vector<1x128x128xf32>
    %15 = vector.shape_cast %14 : vector<1x128x128xf32> to vector<128x128xf32>
    %cst_12 = arith.constant dense<0.000000e+00> : vector<8x128xf32>
    %16 = tpu.matmul %13, %15, %cst_12 {dimension_numbers = #tpu.dot_dimension_numbers<[1], [0], [0], [1], [0, 0, 1, 1], [], []>} : vector<8x128xf32>, vector<128x128xf32>, vector<8x128xf32> -> vector<8x128xf32>
    %c1_13 = arith.constant 1 : index
    %c0_14 = arith.constant 0 : index
    %c0_15 = arith.constant 0 : index
    %17 = vector.load %arg3[%c1_13, %c0_14, %c0_15] : memref<9x1x128xf32, #tpu.memory_space<vmem>>, vector<1x1x128xf32>
    %18 = vector.shape_cast %17 : vector<1x1x128xf32> to vector<1x128xf32>
    %19 = vector.broadcast %18 : vector<1x128xf32> to vector<8x128xf32>
    %20 = arith.addf %16, %19 : vector<8x128xf32>
    %cst_16 = arith.constant 0.000000e+00 : f32
    %21 = vector.broadcast %cst_16 : f32 to vector<8x128xf32>
    %22 = arith.cmpf ogt, %20, %21 : vector<8x128xf32>
    %cst_17 = arith.constant 0.00999999977 : f32
    %23 = vector.broadcast %cst_17 : f32 to vector<8x128xf32>
    %24 = arith.mulf %23, %20 : vector<8x128xf32>
    %25 = arith.select %22, %20, %24 : vector<8x128xi1>, vector<8x128xf32>
    %c2 = arith.constant 2 : index
    %c0_18 = arith.constant 0 : index
    %c0_19 = arith.constant 0 : index
    %26 = vector.load %arg2[%c2, %c0_18, %c0_19] : memref<9x128x128xf32, #tpu.memory_space<vmem>>, vector<1x128x128xf32>
    %27 = vector.shape_cast %26 : vector<1x128x128xf32> to vector<128x128xf32>
    %cst_20 = arith.constant dense<0.000000e+00> : vector<8x128xf32>
    %28 = tpu.matmul %25, %27, %cst_20 {dimension_numbers = #tpu.dot_dimension_numbers<[1], [0], [0], [1], [0, 0, 1, 1], [], []>} : vector<8x128xf32>, vector<128x128xf32>, vector<8x128xf32> -> vector<8x128xf32>
    %c2_21 = arith.constant 2 : index
    %c0_22 = arith.constant 0 : index
    %c0_23 = arith.constant 0 : index
    %29 = vector.load %arg3[%c2_21, %c0_22, %c0_23] : memref<9x1x128xf32, #tpu.memory_space<vmem>>, vector<1x1x128xf32>
    %30 = vector.shape_cast %29 : vector<1x1x128xf32> to vector<1x128xf32>
    %31 = vector.broadcast %30 : vector<1x128xf32> to vector<8x128xf32>
    %32 = arith.addf %28, %31 : vector<8x128xf32>
    %cst_24 = arith.constant 0.000000e+00 : f32
    %33 = vector.broadcast %cst_24 : f32 to vector<8x128xf32>
    %34 = arith.cmpf ogt, %32, %33 : vector<8x128xf32>
    %cst_25 = arith.constant 0.00999999977 : f32
    %35 = vector.broadcast %cst_25 : f32 to vector<8x128xf32>
    %36 = arith.mulf %35, %32 : vector<8x128xf32>
    %37 = arith.select %34, %32, %36 : vector<8x128xi1>, vector<8x128xf32>
    %c3 = arith.constant 3 : index
    %c0_26 = arith.constant 0 : index
    %c0_27 = arith.constant 0 : index
    %38 = vector.load %arg2[%c3, %c0_26, %c0_27] : memref<9x128x128xf32, #tpu.memory_space<vmem>>, vector<1x128x128xf32>
    %39 = vector.shape_cast %38 : vector<1x128x128xf32> to vector<128x128xf32>
    %cst_28 = arith.constant dense<0.000000e+00> : vector<8x128xf32>
    %40 = tpu.matmul %37, %39, %cst_28 {dimension_numbers = #tpu.dot_dimension_numbers<[1], [0], [0], [1], [0, 0, 1, 1], [], []>} : vector<8x128xf32>, vector<128x128xf32>, vector<8x128xf32> -> vector<8x128xf32>
    %c3_29 = arith.constant 3 : index
    %c0_30 = arith.constant 0 : index
    %c0_31 = arith.constant 0 : index
    %41 = vector.load %arg3[%c3_29, %c0_30, %c0_31] : memref<9x1x128xf32, #tpu.memory_space<vmem>>, vector<1x1x128xf32>
    %42 = vector.shape_cast %41 : vector<1x1x128xf32> to vector<1x128xf32>
    %43 = vector.broadcast %42 : vector<1x128xf32> to vector<8x128xf32>
    %44 = arith.addf %40, %43 : vector<8x128xf32>
    %45 = math.tanh %44 : vector<8x128xf32>
    %c4 = arith.constant 4 : index
    %c0_32 = arith.constant 0 : index
    %c0_33 = arith.constant 0 : index
    %46 = vector.load %arg2[%c4, %c0_32, %c0_33] : memref<9x128x128xf32, #tpu.memory_space<vmem>>, vector<1x128x128xf32>
    %47 = vector.shape_cast %46 : vector<1x128x128xf32> to vector<128x128xf32>
    %cst_34 = arith.constant dense<0.000000e+00> : vector<8x128xf32>
    %48 = tpu.matmul %37, %47, %cst_34 {dimension_numbers = #tpu.dot_dimension_numbers<[1], [0], [0], [1], [0, 0, 1, 1], [], []>} : vector<8x128xf32>, vector<128x128xf32>, vector<8x128xf32> -> vector<8x128xf32>
    %c4_35 = arith.constant 4 : index
    %c0_36 = arith.constant 0 : index
    %c0_37 = arith.constant 0 : index
    %49 = vector.load %arg3[%c4_35, %c0_36, %c0_37] : memref<9x1x128xf32, #tpu.memory_space<vmem>>, vector<1x1x128xf32>
    %50 = vector.shape_cast %49 : vector<1x1x128xf32> to vector<1x128xf32>
    %51 = vector.broadcast %50 : vector<1x128xf32> to vector<8x128xf32>
    %52 = arith.addf %48, %51 : vector<8x128xf32>
    %53 = math.tanh %52 : vector<8x128xf32>
    %cst_38 = arith.constant 1.000000e+00 : f32
    %54 = vector.broadcast %cst_38 : f32 to vector<8x128xf32>
    %55 = arith.addf %53, %54 : vector<8x128xf32>
    %cst_39 = arith.constant 5.000000e-01 : f32
    %56 = vector.broadcast %cst_39 : f32 to vector<8x128xf32>
    %57 = arith.mulf %56, %55 : vector<8x128xf32>
    %cst_40 = arith.constant 0.000000e+00 : f32
    %58 = vector.broadcast %cst_40 : f32 to vector<8x128xf32>
    %59 = arith.addf %58, %57 : vector<8x128xf32>
    %cst_41 = arith.constant 1.000000e+00 : f32
    %60 = vector.broadcast %cst_41 : f32 to vector<8x128xf32>
    %61 = arith.addf %45, %60 : vector<8x128xf32>
    %cst_42 = arith.constant 2.000000e+00 : f32
    %62 = vector.broadcast %cst_42 : f32 to vector<8x128xf32>
    %63 = arith.mulf %62, %61 : vector<8x128xf32>
    %cst_43 = arith.constant -2.000000e+00 : f32
    %64 = vector.broadcast %cst_43 : f32 to vector<8x128xf32>
    %65 = arith.addf %64, %63 : vector<8x128xf32>
    %66 = math.exp %59 : vector<8x128xf32>
    %67 = arith.mulf %66, %1 : vector<8x128xf32>
    %68 = arith.addf %65, %67 : vector<8x128xf32>
    %c5 = arith.constant 5 : index
    %c0_44 = arith.constant 0 : index
    %c0_45 = arith.constant 0 : index
    %69 = vector.load %arg2[%c5, %c0_44, %c0_45] : memref<9x128x128xf32, #tpu.memory_space<vmem>>, vector<1x128x128xf32>
    %70 = vector.shape_cast %69 : vector<1x128x128xf32> to vector<128x128xf32>
    %cst_46 = arith.constant dense<0.000000e+00> : vector<8x128xf32>
    %71 = tpu.matmul %68, %70, %cst_46 {dimension_numbers = #tpu.dot_dimension_numbers<[1], [0], [0], [1], [0, 0, 1, 1], [], []>} : vector<8x128xf32>, vector<128x128xf32>, vector<8x128xf32> -> vector<8x128xf32>
    %c5_47 = arith.constant 5 : index
    %c0_48 = arith.constant 0 : index
    %c0_49 = arith.constant 0 : index
    %72 = vector.load %arg3[%c5_47, %c0_48, %c0_49] : memref<9x1x128xf32, #tpu.memory_space<vmem>>, vector<1x1x128xf32>
    %73 = vector.shape_cast %72 : vector<1x1x128xf32> to vector<1x128xf32>
    %74 = vector.broadcast %73 : vector<1x128xf32> to vector<8x128xf32>
    %75 = arith.addf %71, %74 : vector<8x128xf32>
    %cst_50 = arith.constant 0.000000e+00 : f32
    %76 = vector.broadcast %cst_50 : f32 to vector<8x128xf32>
    %77 = arith.cmpf ogt, %75, %76 : vector<8x128xf32>
    %cst_51 = arith.constant 0.00999999977 : f32
    %78 = vector.broadcast %cst_51 : f32 to vector<8x128xf32>
    %79 = arith.mulf %78, %75 : vector<8x128xf32>
    %80 = arith.select %77, %75, %79 : vector<8x128xi1>, vector<8x128xf32>
    %c6 = arith.constant 6 : index
    %c0_52 = arith.constant 0 : index
    %c0_53 = arith.constant 0 : index
    %81 = vector.load %arg2[%c6, %c0_52, %c0_53] : memref<9x128x128xf32, #tpu.memory_space<vmem>>, vector<1x128x128xf32>
    %82 = vector.shape_cast %81 : vector<1x128x128xf32> to vector<128x128xf32>
    %cst_54 = arith.constant dense<0.000000e+00> : vector<8x128xf32>
    %83 = tpu.matmul %80, %82, %cst_54 {dimension_numbers = #tpu.dot_dimension_numbers<[1], [0], [0], [1], [0, 0, 1, 1], [], []>} : vector<8x128xf32>, vector<128x128xf32>, vector<8x128xf32> -> vector<8x128xf32>
    %c6_55 = arith.constant 6 : index
    %c0_56 = arith.constant 0 : index
    %c0_57 = arith.constant 0 : index
    %84 = vector.load %arg3[%c6_55, %c0_56, %c0_57] : memref<9x1x128xf32, #tpu.memory_space<vmem>>, vector<1x1x128xf32>
    %85 = vector.shape_cast %84 : vector<1x1x128xf32> to vector<1x128xf32>
    %86 = vector.broadcast %85 : vector<1x128xf32> to vector<8x128xf32>
    %87 = arith.addf %83, %86 : vector<8x128xf32>
    %cst_58 = arith.constant 0.000000e+00 : f32
    %88 = vector.broadcast %cst_58 : f32 to vector<8x128xf32>
    %89 = arith.cmpf ogt, %87, %88 : vector<8x128xf32>
    %cst_59 = arith.constant 0.00999999977 : f32
    %90 = vector.broadcast %cst_59 : f32 to vector<8x128xf32>
    %91 = arith.mulf %90, %87 : vector<8x128xf32>
    %92 = arith.select %89, %87, %91 : vector<8x128xi1>, vector<8x128xf32>
    %c7 = arith.constant 7 : index
    %c0_60 = arith.constant 0 : index
    %c0_61 = arith.constant 0 : index
    %93 = vector.load %arg2[%c7, %c0_60, %c0_61] : memref<9x128x128xf32, #tpu.memory_space<vmem>>, vector<1x128x128xf32>
    %94 = vector.shape_cast %93 : vector<1x128x128xf32> to vector<128x128xf32>
    %cst_62 = arith.constant dense<0.000000e+00> : vector<8x128xf32>
    %95 = tpu.matmul %92, %94, %cst_62 {dimension_numbers = #tpu.dot_dimension_numbers<[1], [0], [0], [1], [0, 0, 1, 1], [], []>} : vector<8x128xf32>, vector<128x128xf32>, vector<8x128xf32> -> vector<8x128xf32>
    %c7_63 = arith.constant 7 : index
    %c0_64 = arith.constant 0 : index
    %c0_65 = arith.constant 0 : index
    %96 = vector.load %arg3[%c7_63, %c0_64, %c0_65] : memref<9x1x128xf32, #tpu.memory_space<vmem>>, vector<1x1x128xf32>
    %97 = vector.shape_cast %96 : vector<1x1x128xf32> to vector<1x128xf32>
    %98 = vector.broadcast %97 : vector<1x128xf32> to vector<8x128xf32>
    %99 = arith.addf %95, %98 : vector<8x128xf32>
    %cst_66 = arith.constant 0.000000e+00 : f32
    %100 = vector.broadcast %cst_66 : f32 to vector<8x128xf32>
    %101 = arith.cmpf ogt, %99, %100 : vector<8x128xf32>
    %cst_67 = arith.constant 0.00999999977 : f32
    %102 = vector.broadcast %cst_67 : f32 to vector<8x128xf32>
    %103 = arith.mulf %102, %99 : vector<8x128xf32>
    %104 = arith.select %101, %99, %103 : vector<8x128xi1>, vector<8x128xf32>
    %c8 = arith.constant 8 : index
    %c0_68 = arith.constant 0 : index
    %c0_69 = arith.constant 0 : index
    %105 = vector.load %arg2[%c8, %c0_68, %c0_69] : memref<9x128x128xf32, #tpu.memory_space<vmem>>, vector<1x128x128xf32>
    %106 = vector.shape_cast %105 : vector<1x128x128xf32> to vector<128x128xf32>
    %cst_70 = arith.constant dense<0.000000e+00> : vector<8x128xf32>
    %107 = tpu.matmul %104, %106, %cst_70 {dimension_numbers = #tpu.dot_dimension_numbers<[1], [0], [0], [1], [0, 0, 1, 1], [], []>} : vector<8x128xf32>, vector<128x128xf32>, vector<8x128xf32> -> vector<8x128xf32>
    %c8_71 = arith.constant 8 : index
    %c0_72 = arith.constant 0 : index
    %c0_73 = arith.constant 0 : index
    %108 = vector.load %arg3[%c8_71, %c0_72, %c0_73] : memref<9x1x128xf32, #tpu.memory_space<vmem>>, vector<1x1x128xf32>
    %109 = vector.shape_cast %108 : vector<1x1x128xf32> to vector<1x128xf32>
    %110 = vector.broadcast %109 : vector<1x128xf32> to vector<8x128xf32>
    %111 = arith.addf %107, %110 : vector<8x128xf32>
    %c0_74 = arith.constant 0 : index
    %c0_75 = arith.constant 0 : index
    %112 = vector.load %arg4[%c0_74, %c0_75] : memref<8x512xf32, #tpu.memory_space<vmem>>, vector<8x128xf32>
    tpu.vector_store %arg4[%c0_74, %c0_75], %111 {strides = array<i32>} : memref<8x512xf32, #tpu.memory_space<vmem>>, vector<8x128xf32>,
    %c0_76 = arith.constant 0 : index
    %c128_77 = arith.constant 128 : index
    %113 = vector.load %arg4[%c0_76, %c128_77] : memref<8x512xf32, #tpu.memory_space<vmem>>, vector<8x128xf32>
    tpu.vector_store %arg4[%c0_76, %c128_77], %68 {strides = array<i32>} : memref<8x512xf32, #tpu.memory_space<vmem>>, vector<8x128xf32>,
    %c0_78 = arith.constant 0 : index
    %c256 = arith.constant 256 : index
    %114 = vector.load %arg4[%c0_78, %c256] : memref<8x512xf32, #tpu.memory_space<vmem>>, vector<8x128xf32>
    tpu.vector_store %arg4[%c0_78, %c256], %65 {strides = array<i32>} : memref<8x512xf32, #tpu.memory_space<vmem>>, vector<8x128xf32>,
    %c0_79 = arith.constant 0 : index
    %c384 = arith.constant 384 : index
    %115 = vector.load %arg4[%c0_79, %c384] : memref<8x512xf32, #tpu.memory_space<vmem>>, vector<8x128xf32>
    tpu.vector_store %arg4[%c0_79, %c384], %66 {strides = array<i32>} : memref<8x512xf32, #tpu.memory_space<vmem>>, vector<8x128xf32>,
    return
  }
  func.func @transform_0(%arg0: i32) -> (i32, i32) {
    %c0_i32 = arith.constant 0 : i32
    %c0_i32_0 = arith.constant 0 : i32
    return %arg0, %c0_i32 : i32, i32
  }
  func.func @transform_1(%arg0: i32) -> (i32, i32, i32) {
    %c0_i32 = arith.constant 0 : i32
    %c0_i32_0 = arith.constant 0 : i32
    %c0_i32_1 = arith.constant 0 : i32
    %c0_i32_2 = arith.constant 0 : i32
    return %c0_i32, %c0_i32_0, %c0_i32_1 : i32, i32, i32
  }
  func.func @transform_2(%arg0: i32) -> (i32, i32, i32) {
    %c0_i32 = arith.constant 0 : i32
    %c0_i32_0 = arith.constant 0 : i32
    %c0_i32_1 = arith.constant 0 : i32
    %c0_i32_2 = arith.constant 0 : i32
    return %c0_i32, %c0_i32_0, %c0_i32_1 : i32, i32, i32
  }
  func.func @transform_3(%arg0: i32) -> (i32, i32) {
    %c0_i32 = arith.constant 0 : i32
    %c0_i32_0 = arith.constant 0 : i32
    return %arg0, %c0_i32 : i32, i32
  }
}

</mosaic_0001>

<llo_original>
// kernel: vae_forward.1
$region0: #{vae_forward.1}
  #allocation0 [shape = 'u32[]', space=smem, size = 0x4, offset = 0x4, fixed_abs, tag = 'smem constant byte address 0x4 - core index']
  #allocation1 [shape = 'u32[144,128]{1,0:T(1,128)}', space=vmem, size = 0x12000, scoped, tag = 'internal scratch']
  %s0 = inlined_call_operand.vmem [shape: f32[8,256], index: 0, kind: input, shape index: {}]
  %s1 = inlined_call_operand.hbm [shape: f32[9,128,128], index: 1, kind: input, shape index: {}]
  %s2 = inlined_call_operand.vmem [shape: f32[9,1,128], index: 2, kind: input, shape index: {}]
  %s3 = inlined_call_operand.vmem [shape: f32[8,512], index: 3, kind: output, shape index: {}]
  %s4 = sld [smem:[#allocation0]]
  $region26: #{vae_forward.1} parent=0
    _
  %s6 = ssub.s32 1, %s4
  %s7 = scalar_select 0, %s6, %s4
  $region1: #{vae_forward.1} parent=0
    #allocation2 [shape = 'u8[589824]{0}', space=vmem, size = 0x90000, scoped, tag = 'input window, operand 1, single buffered']
    #allocation3 [shape = 's32[1]{0}', space=sflag, size = 0x4, scoped, tag = 'scoped memory for vae_forward.1']
    %8 = vsyncpa [#allocation3], 0
    // Predicated region
    $region2: #{vae_forward.1} parent=1 // pred_check
      _
    $region3: #{vae_forward.1} parent=1 // pred_check_branch
      %10 = sbr.rel (0) target = $region5
    $region4: #{vae_forward.1} parent=1 // pred_region
      _
    $region5: #{vae_forward.1} parent=1 // pred_fallthru
      _
    // Predicated region
    $region6: #{vae_forward.1} parent=1 // pred_check
      _
    $region7: #{vae_forward.1} parent=1 // pred_check_branch
      %12 = sbr.rel (0) target = $region9
    $region8: #{vae_forward.1} parent=1 // pred_region
      %s14 = ssub.s32 18432, 18432
      %15 = vsyncadd [#allocation3], %s14
      %s16 = sshll.u32 [#allocation2], 4
      %s17 = int_to_ptr.vmem [resolvable:$true] %s16
      %22 = dma.hbm_to_vmem [thread:$0]  %s1, 18432, %s17, [#allocation3], 128, 128, 8
    $region9: #{vae_forward.1} parent=1 // pred_fallthru
      _
    // Predicated region
    $region10: #{vae_forward.1} parent=1 // pred_check
      _
    $region11: #{vae_forward.1} parent=1 // pred_check_branch
      %24 = sbr.rel (0) target = $region13
    $region12: #{vae_forward.1} parent=1 // pred_region
      _
    $region13: #{vae_forward.1} parent=1 // pred_fallthru
      _
    // Predicated region
    $region14: #{vae_forward.1} parent=1 // pred_check
      _
    $region15: #{vae_forward.1} parent=1 // pred_check_branch
      %26 = sbr.rel (0) target = $region17
    $region16: #{vae_forward.1} parent=1 // pred_region
      %27 = dma.done [#allocation3], 18432
    $region17: #{vae_forward.1} parent=1 // pred_fallthru
      _
    %v28 = vld [vmem:[%s0] sm:$0xff]
    %v29 = vld [vmem:[%s0 + $0x8] sm:$0xff]
    %v30 = vld [vmem:[#allocation2] sm:$0xff]
    %v31 = vld [vmem:[#allocation2 + $0x8] sm:$0xff]
    %v32 = vld [vmem:[#allocation2 + $0x10] sm:$0xff]
    %v33 = vld [vmem:[#allocation2 + $0x18] sm:$0xff]
    %v34 = vld [vmem:[#allocation2 + $0x20] sm:$0xff]
    %v35 = vld [vmem:[#allocation2 + $0x28] sm:$0xff]
    %v36 = vld [vmem:[#allocation2 + $0x30] sm:$0xff]
    %v37 = vld [vmem:[#allocation2 + $0x38] sm:$0xff]
    %v38 = vld [vmem:[#allocation2 + $0x40] sm:$0xff]
    %v39 = vld [vmem:[#allocation2 + $0x48] sm:$0xff]
    %v40 = vld [vmem:[#allocation2 + $0x50] sm:$0xff]
    %v41 = vld [vmem:[#allocation2 + $0x58] sm:$0xff]
    %v42 = vld [vmem:[#allocation2 + $0x60] sm:$0xff]
    %v43 = vld [vmem:[#allocation2 + $0x68] sm:$0xff]
    %v44 = vld [vmem:[#allocation2 + $0x70] sm:$0xff]
    %v45 = vld [vmem:[#allocation2 + $0x78] sm:$0xff]
    %v46 = vld [vmem:[%s2] sm:$0x1]
    %v48 = vlaneseq
    %v49 = vshrl.u32 %v48, 7
    %v50 = vsub.s32 0, %v49
    %v51 = vrot.slane %v46, %v50
    %53 = vmatprep.subr.mxu0 0.0
    %54 = vmatpush1.msra.mxu0 %v45
    %55 = vmatprep.subr.mxu0 0.0
    %56 = vmatpush1.msra.mxu0 %v44
    %57 = vmatprep.subr.mxu0 0.0
    %58 = vmatpush1.msra.mxu0 %v43
    %59 = vmatprep.subr.mxu0 0.0
    %60 = vmatpush1.msra.mxu0 %v42
    %61 = vmatprep.subr.mxu0 0.0
    %62 = vmatpush1.msra.mxu0 %v41
    %63 = vmatprep.subr.mxu0 0.0
    %64 = vmatpush1.msra.mxu0 %v40
    %65 = vmatprep.subr.mxu0 0.0
    %66 = vmatpush1.msra.mxu0 %v39
    %67 = vmatprep.subr.mxu0 0.0
    %68 = vmatpush1.msra.mxu0 %v38
    %69 = vmatprep.subr.mxu0 0.0
    %70 = vmatpush1.msra.mxu0 %v37
    %71 = vmatprep.subr.mxu0 0.0
    %72 = vmatpush1.msra.mxu0 %v36
    %73 = vmatprep.subr.mxu0 0.0
    %74 = vmatpush1.msra.mxu0 %v35
    %75 = vmatprep.subr.mxu0 0.0
    %76 = vmatpush1.msra.mxu0 %v34
    %77 = vmatprep.subr.mxu0 0.0
    %78 = vmatpush1.msra.mxu0 %v33
    %79 = vmatprep.subr.mxu0 0.0
    %80 = vmatpush1.msra.mxu0 %v32
    %81 = vmatprep.subr.mxu0 0.0
    %82 = vmatpush1.msra.mxu0 %v31
    %83 = vmatprep.subr.mxu0 0.0
    %84 = vmatpush1.msra.mxu0 %v30
    %85 = vmatprep.subr.mxu0 0.0
    %86 = vmatpush2.msra.mxu0 0.0
    %87 = vmatprep.subr.mxu0 0.0
    %88 = vmatpush2.msra.mxu0 0.0
    %89 = vmatprep.subr.mxu0 0.0
    %90 = vmatpush2.msra.mxu0 0.0
    %91 = vmatprep.subr.mxu0 0.0
    %92 = vmatpush2.msra.mxu0 0.0
    %93 = vmatprep.subr.mxu0 0.0
    %94 = vmatpush2.msra.mxu0 0.0
    %95 = vmatprep.subr.mxu0 0.0
    %96 = vmatpush2.msra.mxu0 0.0
    %97 = vmatprep.subr.mxu0 0.0
    %98 = vmatpush2.msra.mxu0 0.0
    %99 = vmatprep.subr.mxu0 0.0
    %100 = vmatpush2.msra.mxu0 0.0
    %101 = vmatprep.subr.mxu0 0.0
    %102 = vmatpush2.msra.mxu0 0.0
    %103 = vmatprep.subr.mxu0 0.0
    %104 = vmatpush2.msra.mxu0 0.0
    %105 = vmatprep.subr.mxu0 0.0
    %106 = vmatpush2.msra.mxu0 0.0
    %107 = vmatprep.subr.mxu0 0.0
    %108 = vmatpush2.msra.mxu0 0.0
    %109 = vmatprep.subr.mxu0 0.0
    %110 = vmatpush2.msra.mxu0 0.0
    %111 = vmatprep.subr.mxu0 0.0
    %112 = vmatpush2.msra.mxu0 0.0
    %113 = vmatprep.subr.mxu0 0.0
    %114 = vmatpush2.msra.mxu0 0.0
    %115 = vmatprep.subr.mxu0 0.0
    %116 = vmatpush2.msra.mxu0 0.0
    %117 = vmatprep.mubr.f32.mxu0 0.0
    %118 = vmatmul.mubr.f32.gmra.mxu0 %v28
    %v119 = vpop.f32.mrf.mxu0
    %v120 = vadd.f32 %v51, %v119
    %v121 = vpop.f32.mrf.mxu0
    %122 = vdwg.mxu0
    %vm123 = vcmp.gt.f32.partialorder %v120, 0.0
    %v124 = vmul.f32 %v120, 0.01
    %v125 = vsel %vm123, %v120, %v124
    %s126 = scalar_lea.vmem [#allocation2], 128
    %v127 = vld [vmem:[%s126] sm:$0xff]
    %v128 = vld [vmem:[%s126 + $0x8] sm:$0xff]
    %v129 = vld [vmem:[%s126 + $0x10] sm:$0xff]
    %v130 = vld [vmem:[%s126 + $0x18] sm:$0xff]
    %v131 = vld [vmem:[%s126 + $0x20] sm:$0xff]
    %v132 = vld [vmem:[%s126 + $0x28] sm:$0xff]
    %v133 = vld [vmem:[%s126 + $0x30] sm:$0xff]
    %v134 = vld [vmem:[%s126 + $0x38] sm:$0xff]
    %v135 = vld [vmem:[%s126 + $0x40] sm:$0xff]
    %v136 = vld [vmem:[%s126 + $0x48] sm:$0xff]
    %v137 = vld [vmem:[%s126 + $0x50] sm:$0xff]
    %v138 = vld [vmem:[%s126 + $0x58] sm:$0xff]
    %v139 = vld [vmem:[%s126 + $0x60] sm:$0xff]
    %v140 = vld [vmem:[%s126 + $0x68] sm:$0xff]
    %v141 = vld [vmem:[%s126 + $0x70] sm:$0xff]
    %v142 = vld [vmem:[%s126 + $0x78] sm:$0xff]
    %s143 = scalar_lea.vmem %s2, 1
    %v144 = vld [vmem:[%s143] sm:$0x1]
    %v146 = vlaneseq
    %v147 = vshrl.u32 %v146, 7
    %v148 = vsub.s32 0, %v147
    %v149 = vrot.slane %v144, %v148
    %151 = vmatprep.subr.mxu0 0.0
    %152 = vmatpush1.msra.mxu0 %v142
    %153 = vmatprep.subr.mxu0 0.0
    %154 = vmatpush1.msra.mxu0 %v141
    %155 = vmatprep.subr.mxu0 0.0
    %156 = vmatpush1.msra.mxu0 %v140
    %157 = vmatprep.subr.mxu0 0.0
    %158 = vmatpush1.msra.mxu0 %v139
    %159 = vmatprep.subr.mxu0 0.0
    %160 = vmatpush1.msra.mxu0 %v138
    %161 = vmatprep.subr.mxu0 0.0
    %162 = vmatpush1.msra.mxu0 %v137
    %163 = vmatprep.subr.mxu0 0.0
    %164 = vmatpush1.msra.mxu0 %v136
    %165 = vmatprep.subr.mxu0 0.0
    %166 = vmatpush1.msra.mxu0 %v135
    %167 = vmatprep.subr.mxu0 0.0
    %168 = vmatpush1.msra.mxu0 %v134
    %169 = vmatprep.subr.mxu0 0.0
    %170 = vmatpush1.msra.mxu0 %v133
    %171 = vmatprep.subr.mxu0 0.0
    %172 = vmatpush1.msra.mxu0 %v132
    %173 = vmatprep.subr.mxu0 0.0
    %174 = vmatpush1.msra.mxu0 %v131
    %175 = vmatprep.subr.mxu0 0.0
    %176 = vmatpush1.msra.mxu0 %v130
    %177 = vmatprep.subr.mxu0 0.0
    %178 = vmatpush1.msra.mxu0 %v129
    %179 = vmatprep.subr.mxu0 0.0
    %180 = vmatpush1.msra.mxu0 %v128
    %181 = vmatprep.subr.mxu0 0.0
    %182 = vmatpush1.msra.mxu0 %v127
    %183 = vmatprep.subr.mxu0 0.0
    %184 = vmatpush2.msra.mxu0 0.0
    %185 = vmatprep.subr.mxu0 0.0
    %186 = vmatpush2.msra.mxu0 0.0
    %187 = vmatprep.subr.mxu0 0.0
    %188 = vmatpush2.msra.mxu0 0.0
    %189 = vmatprep.subr.mxu0 0.0
    %190 = vmatpush2.msra.mxu0 0.0
    %191 = vmatprep.subr.mxu0 0.0
    %192 = vmatpush2.msra.mxu0 0.0
    %193 = vmatprep.subr.mxu0 0.0
    %194 = vmatpush2.msra.mxu0 0.0
    %195 = vmatprep.subr.mxu0 0.0
    %196 = vmatpush2.msra.mxu0 0.0
    %197 = vmatprep.subr.mxu0 0.0
    %198 = vmatpush2.msra.mxu0 0.0
    %199 = vmatprep.subr.mxu0 0.0
    %200 = vmatpush2.msra.mxu0 0.0
    %201 = vmatprep.subr.mxu0 0.0
    %202 = vmatpush2.msra.mxu0 0.0
    %203 = vmatprep.subr.mxu0 0.0
    %204 = vmatpush2.msra.mxu0 0.0
    %205 = vmatprep.subr.mxu0 0.0
    %206 = vmatpush2.msra.mxu0 0.0
    %207 = vmatprep.subr.mxu0 0.0
    %208 = vmatpush2.msra.mxu0 0.0
    %209 = vmatprep.subr.mxu0 0.0
    %210 = vmatpush2.msra.mxu0 0.0
    %211 = vmatprep.subr.mxu0 0.0
    %212 = vmatpush2.msra.mxu0 0.0
    %213 = vmatprep.subr.mxu0 0.0
    %214 = vmatpush2.msra.mxu0 0.0
    %215 = vmatprep.mubr.f32.mxu0 0.0
    %216 = vmatmul.mubr.f32.gmra.mxu0 %v125
    %v217 = vpop.f32.mrf.mxu0
    %v218 = vadd.f32 %v149, %v217
    %v219 = vpop.f32.mrf.mxu0
    %220 = vdwg.mxu0
    %vm221 = vcmp.gt.f32.partialorder %v218, 0.0
    %v222 = vmul.f32 %v218, 0.01
    %v223 = vsel %vm221, %v218, %v222
    %s224 = scalar_lea.vmem [#allocation2], 256
    %v225 = vld [vmem:[%s224] sm:$0xff]
    %v226 = vld [vmem:[%s224 + $0x8] sm:$0xff]
    %v227 = vld [vmem:[%s224 + $0x10] sm:$0xff]
    %v228 = vld [vmem:[%s224 + $0x18] sm:$0xff]
    %v229 = vld [vmem:[%s224 + $0x20] sm:$0xff]
    %v230 = vld [vmem:[%s224 + $0x28] sm:$0xff]
    %v231 = vld [vmem:[%s224 + $0x30] sm:$0xff]
    %v232 = vld [vmem:[%s224 + $0x38] sm:$0xff]
    %v233 = vld [vmem:[%s224 + $0x40] sm:$0xff]
    %v234 = vld [vmem:[%s224 + $0x48] sm:$0xff]
    %v235 = vld [vmem:[%s224 + $0x50] sm:$0xff]
    %v236 = vld [vmem:[%s224 + $0x58] sm:$0xff]
    %v237 = vld [vmem:[%s224 + $0x60] sm:$0xff]
    %v238 = vld [vmem:[%s224 + $0x68] sm:$0xff]
    %v239 = vld [vmem:[%s224 + $0x70] sm:$0xff]
    %v240 = vld [vmem:[%s224 + $0x78] sm:$0xff]
    %s241 = scalar_lea.vmem %s2, 2
    %v242 = vld [vmem:[%s241] sm:$0x1]
    %v244 = vlaneseq
    %v245 = vshrl.u32 %v244, 7
    %v246 = vsub.s32 0, %v245
    %v247 = vrot.slane %v242, %v246
    %249 = vmatprep.subr.mxu0 0.0
    %250 = vmatpush1.msra.mxu0 %v240
    %251 = vmatprep.subr.mxu0 0.0
    %252 = vmatpush1.msra.mxu0 %v239
    %253 = vmatprep.subr.mxu0 0.0
    %254 = vmatpush1.msra.mxu0 %v238
    %255 = vmatprep.subr.mxu0 0.0
    %256 = vmatpush1.msra.mxu0 %v237
    %257 = vmatprep.subr.mxu0 0.0
    %258 = vmatpush1.msra.mxu0 %v236
    %259 = vmatprep.subr.mxu0 0.0
    %260 = vmatpush1.msra.mxu0 %v235
    %261 = vmatprep.subr.mxu0 0.0
    %262 = vmatpush1.msra.mxu0 %v234
    %263 = vmatprep.subr.mxu0 0.0
    %264 = vmatpush1.msra.mxu0 %v233
    %265 = vmatprep.subr.mxu0 0.0
    %266 = vmatpush1.msra.mxu0 %v232
    %267 = vmatprep.subr.mxu0 0.0
    %268 = vmatpush1.msra.mxu0 %v231
    %269 = vmatprep.subr.mxu0 0.0
    %270 = vmatpush1.msra.mxu0 %v230
    %271 = vmatprep.subr.mxu0 0.0
    %272 = vmatpush1.msra.mxu0 %v229
    %273 = vmatprep.subr.mxu0 0.0
    %274 = vmatpush1.msra.mxu0 %v228
    %275 = vmatprep.subr.mxu0 0.0
    %276 = vmatpush1.msra.mxu0 %v227
    %277 = vmatprep.subr.mxu0 0.0
    %278 = vmatpush1.msra.mxu0 %v226
    %279 = vmatprep.subr.mxu0 0.0
    %280 = vmatpush1.msra.mxu0 %v225
    %281 = vmatprep.subr.mxu0 0.0
    %282 = vmatpush2.msra.mxu0 0.0
    %283 = vmatprep.subr.mxu0 0.0
    %284 = vmatpush2.msra.mxu0 0.0
    %285 = vmatprep.subr.mxu0 0.0
    %286 = vmatpush2.msra.mxu0 0.0
    %287 = vmatprep.subr.mxu0 0.0
    %288 = vmatpush2.msra.mxu0 0.0
    %289 = vmatprep.subr.mxu0 0.0
    %290 = vmatpush2.msra.mxu0 0.0
    %291 = vmatprep.subr.mxu0 0.0
    %292 = vmatpush2.msra.mxu0 0.0
    %293 = vmatprep.subr.mxu0 0.0
    %294 = vmatpush2.msra.mxu0 0.0
    %295 = vmatprep.subr.mxu0 0.0
    %296 = vmatpush2.msra.mxu0 0.0
    %297 = vmatprep.subr.mxu0 0.0
    %298 = vmatpush2.msra.mxu0 0.0
    %299 = vmatprep.subr.mxu0 0.0
    %300 = vmatpush2.msra.mxu0 0.0
    %301 = vmatprep.subr.mxu0 0.0
    %302 = vmatpush2.msra.mxu0 0.0
    %303 = vmatprep.subr.mxu0 0.0
    %304 = vmatpush2.msra.mxu0 0.0
    %305 = vmatprep.subr.mxu0 0.0
    %306 = vmatpush2.msra.mxu0 0.0
    %307 = vmatprep.subr.mxu0 0.0
    %308 = vmatpush2.msra.mxu0 0.0
    %309 = vmatprep.subr.mxu0 0.0
    %310 = vmatpush2.msra.mxu0 0.0
    %311 = vmatprep.subr.mxu0 0.0
    %312 = vmatpush2.msra.mxu0 0.0
    %313 = vmatprep.mubr.f32.mxu0 0.0
    %314 = vmatmul.mubr.f32.gmra.mxu0 %v223
    %v315 = vpop.f32.mrf.mxu0
    %v316 = vadd.f32 %v247, %v315
    %v317 = vpop.f32.mrf.mxu0
    %318 = vdwg.mxu0
    %vm319 = vcmp.gt.f32.partialorder %v316, 0.0
    %v320 = vmul.f32 %v316, 0.01
    %v321 = vsel %vm319, %v316, %v320
    %s322 = scalar_lea.vmem [#allocation2], 384
    %v323 = vld [vmem:[%s322] sm:$0xff]
    %v324 = vld [vmem:[%s322 + $0x8] sm:$0xff]
    %v325 = vld [vmem:[%s322 + $0x10] sm:$0xff]
    %v326 = vld [vmem:[%s322 + $0x18] sm:$0xff]
    %v327 = vld [vmem:[%s322 + $0x20] sm:$0xff]
    %v328 = vld [vmem:[%s322 + $0x28] sm:$0xff]
    %v329 = vld [vmem:[%s322 + $0x30] sm:$0xff]
    %v330 = vld [vmem:[%s322 + $0x38] sm:$0xff]
    %v331 = vld [vmem:[%s322 + $0x40] sm:$0xff]
    %v332 = vld [vmem:[%s322 + $0x48] sm:$0xff]
    %v333 = vld [vmem:[%s322 + $0x50] sm:$0xff]
    %v334 = vld [vmem:[%s322 + $0x58] sm:$0xff]
    %v335 = vld [vmem:[%s322 + $0x60] sm:$0xff]
    %v336 = vld [vmem:[%s322 + $0x68] sm:$0xff]
    %v337 = vld [vmem:[%s322 + $0x70] sm:$0xff]
    %v338 = vld [vmem:[%s322 + $0x78] sm:$0xff]
    %s339 = scalar_lea.vmem %s2, 3
    %v340 = vld [vmem:[%s339] sm:$0x1]
    %v342 = vlaneseq
    %v343 = vshrl.u32 %v342, 7
    %v344 = vsub.s32 0, %v343
    %v345 = vrot.slane %v340, %v344
    %347 = vmatprep.subr.mxu0 0.0
    %348 = vmatpush1.msra.mxu0 %v338
    %349 = vmatprep.subr.mxu0 0.0
    %350 = vmatpush1.msra.mxu0 %v337
    %351 = vmatprep.subr.mxu0 0.0
    %352 = vmatpush1.msra.mxu0 %v336
    %353 = vmatprep.subr.mxu0 0.0
    %354 = vmatpush1.msra.mxu0 %v335
    %355 = vmatprep.subr.mxu0 0.0
    %356 = vmatpush1.msra.mxu0 %v334
    %357 = vmatprep.subr.mxu0 0.0
    %358 = vmatpush1.msra.mxu0 %v333
    %359 = vmatprep.subr.mxu0 0.0
    %360 = vmatpush1.msra.mxu0 %v332
    %361 = vmatprep.subr.mxu0 0.0
    %362 = vmatpush1.msra.mxu0 %v331
    %363 = vmatprep.subr.mxu0 0.0
    %364 = vmatpush1.msra.mxu0 %v330
    %365 = vmatprep.subr.mxu0 0.0
    %366 = vmatpush1.msra.mxu0 %v329
    %367 = vmatprep.subr.mxu0 0.0
    %368 = vmatpush1.msra.mxu0 %v328
    %369 = vmatprep.subr.mxu0 0.0
    %370 = vmatpush1.msra.mxu0 %v327
    %371 = vmatprep.subr.mxu0 0.0
    %372 = vmatpush1.msra.mxu0 %v326
    %373 = vmatprep.subr.mxu0 0.0
    %374 = vmatpush1.msra.mxu0 %v325
    %375 = vmatprep.subr.mxu0 0.0
    %376 = vmatpush1.msra.mxu0 %v324
    %377 = vmatprep.subr.mxu0 0.0
    %378 = vmatpush1.msra.mxu0 %v323
    %379 = vmatprep.subr.mxu0 0.0
    %380 = vmatpush2.msra.mxu0 0.0
    %381 = vmatprep.subr.mxu0 0.0
    %382 = vmatpush2.msra.mxu0 0.0
    %383 = vmatprep.subr.mxu0 0.0
    %384 = vmatpush2.msra.mxu0 0.0
    %385 = vmatprep.subr.mxu0 0.0
    %386 = vmatpush2.msra.mxu0 0.0
    %387 = vmatprep.subr.mxu0 0.0
    %388 = vmatpush2.msra.mxu0 0.0
    %389 = vmatprep.subr.mxu0 0.0
    %390 = vmatpush2.msra.mxu0 0.0
    %391 = vmatprep.subr.mxu0 0.0
    %392 = vmatpush2.msra.mxu0 0.0
    %393 = vmatprep.subr.mxu0 0.0
    %394 = vmatpush2.msra.mxu0 0.0
    %395 = vmatprep.subr.mxu0 0.0
    %396 = vmatpush2.msra.mxu0 0.0
    %397 = vmatprep.subr.mxu0 0.0
    %398 = vmatpush2.msra.mxu0 0.0
    %399 = vmatprep.subr.mxu0 0.0
    %400 = vmatpush2.msra.mxu0 0.0
    %401 = vmatprep.subr.mxu0 0.0
    %402 = vmatpush2.msra.mxu0 0.0
    %403 = vmatprep.subr.mxu0 0.0
    %404 = vmatpush2.msra.mxu0 0.0
    %405 = vmatprep.subr.mxu0 0.0
    %406 = vmatpush2.msra.mxu0 0.0
    %407 = vmatprep.subr.mxu0 0.0
    %408 = vmatpush2.msra.mxu0 0.0
    %409 = vmatprep.subr.mxu0 0.0
    %410 = vmatpush2.msra.mxu0 0.0
    %411 = vmatprep.mubr.f32.mxu0 0.0
    %412 = vmatmul.mubr.f32.gmra.mxu0 %v321
    %v413 = vpop.f32.mrf.mxu0
    %v414 = vadd.f32 %v345, %v413
    %v415 = vpop.f32.mrf.mxu0
    %416 = vdwg.mxu0
    %v417 = vtanh.pop %v414
    %s418 = scalar_lea.vmem [#allocation2], 512
    %v419 = vld [vmem:[%s418] sm:$0xff]
    %v420 = vld [vmem:[%s418 + $0x8] sm:$0xff]
    %v421 = vld [vmem:[%s418 + $0x10] sm:$0xff]
    %v422 = vld [vmem:[%s418 + $0x18] sm:$0xff]
    %v423 = vld [vmem:[%s418 + $0x20] sm:$0xff]
    %v424 = vld [vmem:[%s418 + $0x28] sm:$0xff]
    %v425 = vld [vmem:[%s418 + $0x30] sm:$0xff]
    %v426 = vld [vmem:[%s418 + $0x38] sm:$0xff]
    %v427 = vld [vmem:[%s418 + $0x40] sm:$0xff]
    %v428 = vld [vmem:[%s418 + $0x48] sm:$0xff]
    %v429 = vld [vmem:[%s418 + $0x50] sm:$0xff]
    %v430 = vld [vmem:[%s418 + $0x58] sm:$0xff]
    %v431 = vld [vmem:[%s418 + $0x60] sm:$0xff]
    %v432 = vld [vmem:[%s418 + $0x68] sm:$0xff]
    %v433 = vld [vmem:[%s418 + $0x70] sm:$0xff]
    %v434 = vld [vmem:[%s418 + $0x78] sm:$0xff]
    %s435 = scalar_lea.vmem %s2, 4
    %v436 = vld [vmem:[%s435] sm:$0x1]
    %v438 = vlaneseq
    %v439 = vshrl.u32 %v438, 7
    %v440 = vsub.s32 0, %v439
    %v441 = vrot.slane %v436, %v440
    %443 = vmatprep.subr.mxu0 0.0
    %444 = vmatpush1.msra.mxu0 %v434
    %445 = vmatprep.subr.mxu0 0.0
    %446 = vmatpush1.msra.mxu0 %v433
    %447 = vmatprep.subr.mxu0 0.0
    %448 = vmatpush1.msra.mxu0 %v432
    %449 = vmatprep.subr.mxu0 0.0
    %450 = vmatpush1.msra.mxu0 %v431
    %451 = vmatprep.subr.mxu0 0.0
    %452 = vmatpush1.msra.mxu0 %v430
    %453 = vmatprep.subr.mxu0 0.0
    %454 = vmatpush1.msra.mxu0 %v429
    %455 = vmatprep.subr.mxu0 0.0
    %456 = vmatpush1.msra.mxu0 %v428
    %457 = vmatprep.subr.mxu0 0.0
    %458 = vmatpush1.msra.mxu0 %v427
    %459 = vmatprep.subr.mxu0 0.0
    %460 = vmatpush1.msra.mxu0 %v426
    %461 = vmatprep.subr.mxu0 0.0
    %462 = vmatpush1.msra.mxu0 %v425
    %463 = vmatprep.subr.mxu0 0.0
    %464 = vmatpush1.msra.mxu0 %v424
    %465 = vmatprep.subr.mxu0 0.0
    %466 = vmatpush1.msra.mxu0 %v423
    %467 = vmatprep.subr.mxu0 0.0
    %468 = vmatpush1.msra.mxu0 %v422
    %469 = vmatprep.subr.mxu0 0.0
    %470 = vmatpush1.msra.mxu0 %v421
    %471 = vmatprep.subr.mxu0 0.0
    %472 = vmatpush1.msra.mxu0 %v420
    %473 = vmatprep.subr.mxu0 0.0
    %474 = vmatpush1.msra.mxu0 %v419
    %475 = vmatprep.subr.mxu0 0.0
    %476 = vmatpush2.msra.mxu0 0.0
    %477 = vmatprep.subr.mxu0 0.0
    %478 = vmatpush2.msra.mxu0 0.0
    %479 = vmatprep.subr.mxu0 0.0
    %480 = vmatpush2.msra.mxu0 0.0
    %481 = vmatprep.subr.mxu0 0.0
    %482 = vmatpush2.msra.mxu0 0.0
    %483 = vmatprep.subr.mxu0 0.0
    %484 = vmatpush2.msra.mxu0 0.0
    %485 = vmatprep.subr.mxu0 0.0
    %486 = vmatpush2.msra.mxu0 0.0
    %487 = vmatprep.subr.mxu0 0.0
    %488 = vmatpush2.msra.mxu0 0.0
    %489 = vmatprep.subr.mxu0 0.0
    %490 = vmatpush2.msra.mxu0 0.0
    %491 = vmatprep.subr.mxu0 0.0
    %492 = vmatpush2.msra.mxu0 0.0
    %493 = vmatprep.subr.mxu0 0.0
    %494 = vmatpush2.msra.mxu0 0.0
    %495 = vmatprep.subr.mxu0 0.0
    %496 = vmatpush2.msra.mxu0 0.0
    %497 = vmatprep.subr.mxu0 0.0
    %498 = vmatpush2.msra.mxu0 0.0
    %499 = vmatprep.subr.mxu0 0.0
    %500 = vmatpush2.msra.mxu0 0.0
    %501 = vmatprep.subr.mxu0 0.0
    %502 = vmatpush2.msra.mxu0 0.0
    %503 = vmatprep.subr.mxu0 0.0
    %504 = vmatpush2.msra.mxu0 0.0
    %505 = vmatprep.subr.mxu0 0.0
    %506 = vmatpush2.msra.mxu0 0.0
    %507 = vmatprep.mubr.f32.mxu0 0.0
    %508 = vmatmul.mubr.f32.gmra.mxu0 %v321
    %v509 = vpop.f32.mrf.mxu0
    %v510 = vadd.f32 %v441, %v509
    %v511 = vpop.f32.mrf.mxu0
    %512 = vdwg.mxu0
    %v513 = vtanh.pop %v510
    %v514 = vadd.f32 %v513, 1.0
    %v515 = vmul.f32 %v514, 0.5
    %v516 = vadd.f32 %v515, 0.0
    %v517 = vadd.f32 %v417, 1.0
    %v518 = vmul.f32 %v517, 2.0
    %v519 = vadd.f32 %v518, -2.0
    %v520 = vmul.f32 %v516, 1.442695
    %v521 = vpow.pop %v520
    %v522 = vmul.f32 %v521, %v29
    %v523 = vadd.f32 %v519, %v522
    %s524 = scalar_lea.vmem [#allocation2], 640
    %v525 = vld [vmem:[%s524] sm:$0xff]
    %v526 = vld [vmem:[%s524 + $0x8] sm:$0xff]
    %v527 = vld [vmem:[%s524 + $0x10] sm:$0xff]
    %v528 = vld [vmem:[%s524 + $0x18] sm:$0xff]
    %v529 = vld [vmem:[%s524 + $0x20] sm:$0xff]
    %v530 = vld [vmem:[%s524 + $0x28] sm:$0xff]
    %v531 = vld [vmem:[%s524 + $0x30] sm:$0xff]
    %v532 = vld [vmem:[%s524 + $0x38] sm:$0xff]
    %v533 = vld [vmem:[%s524 + $0x40] sm:$0xff]
    %v534 = vld [vmem:[%s524 + $0x48] sm:$0xff]
    %v535 = vld [vmem:[%s524 + $0x50] sm:$0xff]
    %v536 = vld [vmem:[%s524 + $0x58] sm:$0xff]
    %v537 = vld [vmem:[%s524 + $0x60] sm:$0xff]
    %v538 = vld [vmem:[%s524 + $0x68] sm:$0xff]
    %v539 = vld [vmem:[%s524 + $0x70] sm:$0xff]
    %v540 = vld [vmem:[%s524 + $0x78] sm:$0xff]
    %s541 = scalar_lea.vmem %s2, 5
    %v542 = vld [vmem:[%s541] sm:$0x1]
    %v544 = vlaneseq
    %v545 = vshrl.u32 %v544, 7
    %v546 = vsub.s32 0, %v545
    %v547 = vrot.slane %v542, %v546
    %549 = vmatprep.subr.mxu0 0.0
    %550 = vmatpush1.msra.mxu0 %v540
    %551 = vmatprep.subr.mxu0 0.0
    %552 = vmatpush1.msra.mxu0 %v539
    %553 = vmatprep.subr.mxu0 0.0
    %554 = vmatpush1.msra.mxu0 %v538
    %555 = vmatprep.subr.mxu0 0.0
    %556 = vmatpush1.msra.mxu0 %v537
    %557 = vmatprep.subr.mxu0 0.0
    %558 = vmatpush1.msra.mxu0 %v536
    %559 = vmatprep.subr.mxu0 0.0
    %560 = vmatpush1.msra.mxu0 %v535
    %561 = vmatprep.subr.mxu0 0.0
    %562 = vmatpush1.msra.mxu0 %v534
    %563 = vmatprep.subr.mxu0 0.0
    %564 = vmatpush1.msra.mxu0 %v533
    %565 = vmatprep.subr.mxu0 0.0
    %566 = vmatpush1.msra.mxu0 %v532
    %567 = vmatprep.subr.mxu0 0.0
    %568 = vmatpush1.msra.mxu0 %v531
    %569 = vmatprep.subr.mxu0 0.0
    %570 = vmatpush1.msra.mxu0 %v530
    %571 = vmatprep.subr.mxu0 0.0
    %572 = vmatpush1.msra.mxu0 %v529
    %573 = vmatprep.subr.mxu0 0.0
    %574 = vmatpush1.msra.mxu0 %v528
    %575 = vmatprep.subr.mxu0 0.0
    %576 = vmatpush1.msra.mxu0 %v527
    %577 = vmatprep.subr.mxu0 0.0
    %578 = vmatpush1.msra.mxu0 %v526
    %579 = vmatprep.subr.mxu0 0.0
    %580 = vmatpush1.msra.mxu0 %v525
    %581 = vmatprep.subr.mxu0 0.0
    %582 = vmatpush2.msra.mxu0 0.0
    %583 = vmatprep.subr.mxu0 0.0
    %584 = vmatpush2.msra.mxu0 0.0
    %585 = vmatprep.subr.mxu0 0.0
    %586 = vmatpush2.msra.mxu0 0.0
    %587 = vmatprep.subr.mxu0 0.0
    %588 = vmatpush2.msra.mxu0 0.0
    %589 = vmatprep.subr.mxu0 0.0
    %590 = vmatpush2.msra.mxu0 0.0
    %591 = vmatprep.subr.mxu0 0.0
    %592 = vmatpush2.msra.mxu0 0.0
    %593 = vmatprep.subr.mxu0 0.0
    %594 = vmatpush2.msra.mxu0 0.0
    %595 = vmatprep.subr.mxu0 0.0
    %596 = vmatpush2.msra.mxu0 0.0
    %597 = vmatprep.subr.mxu0 0.0
    %598 = vmatpush2.msra.mxu0 0.0
    %599 = vmatprep.subr.mxu0 0.0
    %600 = vmatpush2.msra.mxu0 0.0
    %601 = vmatprep.subr.mxu0 0.0
    %602 = vmatpush2.msra.mxu0 0.0
    %603 = vmatprep.subr.mxu0 0.0
    %604 = vmatpush2.msra.mxu0 0.0
    %605 = vmatprep.subr.mxu0 0.0
    %606 = vmatpush2.msra.mxu0 0.0
    %607 = vmatprep.subr.mxu0 0.0
    %608 = vmatpush2.msra.mxu0 0.0
    %609 = vmatprep.subr.mxu0 0.0
    %610 = vmatpush2.msra.mxu0 0.0
    %611 = vmatprep.subr.mxu0 0.0
    %612 = vmatpush2.msra.mxu0 0.0
    %613 = vmatprep.mubr.f32.mxu0 0.0
    %614 = vmatmul.mubr.f32.gmra.mxu0 %v523
    %v615 = vpop.f32.mrf.mxu0
    %v616 = vadd.f32 %v547, %v615
    %v617 = vpop.f32.mrf.mxu0
    %618 = vdwg.mxu0
    %vm619 = vcmp.gt.f32.partialorder %v616, 0.0
    %v620 = vmul.f32 %v616, 0.01
    %v621 = vsel %vm619, %v616, %v620
    %s622 = scalar_lea.vmem [#allocation2], 768
    %v623 = vld [vmem:[%s622] sm:$0xff]
    %v624 = vld [vmem:[%s622 + $0x8] sm:$0xff]
    %v625 = vld [vmem:[%s622 + $0x10] sm:$0xff]
    %v626 = vld [vmem:[%s622 + $0x18] sm:$0xff]
    %v627 = vld [vmem:[%s622 + $0x20] sm:$0xff]
    %v628 = vld [vmem:[%s622 + $0x28] sm:$0xff]
    %v629 = vld [vmem:[%s622 + $0x30] sm:$0xff]
    %v630 = vld [vmem:[%s622 + $0x38] sm:$0xff]
    %v631 = vld [vmem:[%s622 + $0x40] sm:$0xff]
    %v632 = vld [vmem:[%s622 + $0x48] sm:$0xff]
    %v633 = vld [vmem:[%s622 + $0x50] sm:$0xff]
    %v634 = vld [vmem:[%s622 + $0x58] sm:$0xff]
    %v635 = vld [vmem:[%s622 + $0x60] sm:$0xff]
    %v636 = vld [vmem:[%s622 + $0x68] sm:$0xff]
    %v637 = vld [vmem:[%s622 + $0x70] sm:$0xff]
    %v638 = vld [vmem:[%s622 + $0x78] sm:$0xff]
    %s639 = scalar_lea.vmem %s2, 6
    %v640 = vld [vmem:[%s639] sm:$0x1]
    %v642 = vlaneseq
    %v643 = vshrl.u32 %v642, 7
    %v644 = vsub.s32 0, %v643
    %v645 = vrot.slane %v640, %v644
    %647 = vmatprep.subr.mxu0 0.0
    %648 = vmatpush1.msra.mxu0 %v638
    %649 = vmatprep.subr.mxu0 0.0
    %650 = vmatpush1.msra.mxu0 %v637
    %651 = vmatprep.subr.mxu0 0.0
    %652 = vmatpush1.msra.mxu0 %v636
    %653 = vmatprep.subr.mxu0 0.0
    %654 = vmatpush1.msra.mxu0 %v635
    %655 = vmatprep.subr.mxu0 0.0
    %656 = vmatpush1.msra.mxu0 %v634
    %657 = vmatprep.subr.mxu0 0.0
    %658 = vmatpush1.msra.mxu0 %v633
    %659 = vmatprep.subr.mxu0 0.0
    %660 = vmatpush1.msra.mxu0 %v632
    %661 = vmatprep.subr.mxu0 0.0
    %662 = vmatpush1.msra.mxu0 %v631
    %663 = vmatprep.subr.mxu0 0.0
    %664 = vmatpush1.msra.mxu0 %v630
    %665 = vmatprep.subr.mxu0 0.0
    %666 = vmatpush1.msra.mxu0 %v629
    %667 = vmatprep.subr.mxu0 0.0
    %668 = vmatpush1.msra.mxu0 %v628
    %669 = vmatprep.subr.mxu0 0.0
    %670 = vmatpush1.msra.mxu0 %v627
    %671 = vmatprep.subr.mxu0 0.0
    %672 = vmatpush1.msra.mxu0 %v626
    %673 = vmatprep.subr.mxu0 0.0
    %674 = vmatpush1.msra.mxu0 %v625
    %675 = vmatprep.subr.mxu0 0.0
    %676 = vmatpush1.msra.mxu0 %v624
    %677 = vmatprep.subr.mxu0 0.0
    %678 = vmatpush1.msra.mxu0 %v623
    %679 = vmatprep.subr.mxu0 0.0
    %680 = vmatpush2.msra.mxu0 0.0
    %681 = vmatprep.subr.mxu0 0.0
    %682 = vmatpush2.msra.mxu0 0.0
    %683 = vmatprep.subr.mxu0 0.0
    %684 = vmatpush2.msra.mxu0 0.0
    %685 = vmatprep.subr.mxu0 0.0
    %686 = vmatpush2.msra.mxu0 0.0
    %687 = vmatprep.subr.mxu0 0.0
    %688 = vmatpush2.msra.mxu0 0.0
    %689 = vmatprep.subr.mxu0 0.0
    %690 = vmatpush2.msra.mxu0 0.0
    %691 = vmatprep.subr.mxu0 0.0
    %692 = vmatpush2.msra.mxu0 0.0
    %693 = vmatprep.subr.mxu0 0.0
    %694 = vmatpush2.msra.mxu0 0.0
    %695 = vmatprep.subr.mxu0 0.0
    %696 = vmatpush2.msra.mxu0 0.0
    %697 = vmatprep.subr.mxu0 0.0
    %698 = vmatpush2.msra.mxu0 0.0
    %699 = vmatprep.subr.mxu0 0.0
    %700 = vmatpush2.msra.mxu0 0.0
    %701 = vmatprep.subr.mxu0 0.0
    %702 = vmatpush2.msra.mxu0 0.0
    %703 = vmatprep.subr.mxu0 0.0
    %704 = vmatpush2.msra.mxu0 0.0
    %705 = vmatprep.subr.mxu0 0.0
    %706 = vmatpush2.msra.mxu0 0.0
    %707 = vmatprep.subr.mxu0 0.0
    %708 = vmatpush2.msra.mxu0 0.0
    %709 = vmatprep.subr.mxu0 0.0
    %710 = vmatpush2.msra.mxu0 0.0
    %711 = vmatprep.mubr.f32.mxu0 0.0
    %712 = vmatmul.mubr.f32.gmra.mxu0 %v621
    %v713 = vpop.f32.mrf.mxu0
    %v714 = vadd.f32 %v645, %v713
    %v715 = vpop.f32.mrf.mxu0
    %716 = vdwg.mxu0
    %vm717 = vcmp.gt.f32.partialorder %v714, 0.0
    %v718 = vmul.f32 %v714, 0.01
    %v719 = vsel %vm717, %v714, %v718
    %s720 = scalar_lea.vmem [#allocation2], 896
    %v721 = vld [vmem:[%s720] sm:$0xff]
    %v722 = vld [vmem:[%s720 + $0x8] sm:$0xff]
    %v723 = vld [vmem:[%s720 + $0x10] sm:$0xff]
    %v724 = vld [vmem:[%s720 + $0x18] sm:$0xff]
    %v725 = vld [vmem:[%s720 + $0x20] sm:$0xff]
    %v726 = vld [vmem:[%s720 + $0x28] sm:$0xff]
    %v727 = vld [vmem:[%s720 + $0x30] sm:$0xff]
    %v728 = vld [vmem:[%s720 + $0x38] sm:$0xff]
    %v729 = vld [vmem:[%s720 + $0x40] sm:$0xff]
    %v730 = vld [vmem:[%s720 + $0x48] sm:$0xff]
    %v731 = vld [vmem:[%s720 + $0x50] sm:$0xff]
    %v732 = vld [vmem:[%s720 + $0x58] sm:$0xff]
    %v733 = vld [vmem:[%s720 + $0x60] sm:$0xff]
    %v734 = vld [vmem:[%s720 + $0x68] sm:$0xff]
    %v735 = vld [vmem:[%s720 + $0x70] sm:$0xff]
    %v736 = vld [vmem:[%s720 + $0x78] sm:$0xff]
    %s737 = scalar_lea.vmem %s2, 7
    %v738 = vld [vmem:[%s737] sm:$0x1]
    %v740 = vlaneseq
    %v741 = vshrl.u32 %v740, 7
    %v742 = vsub.s32 0, %v741
    %v743 = vrot.slane %v738, %v742
    %745 = vmatprep.subr.mxu0 0.0
    %746 = vmatpush1.msra.mxu0 %v736
    %747 = vmatprep.subr.mxu0 0.0
    %748 = vmatpush1.msra.mxu0 %v735
    %749 = vmatprep.subr.mxu0 0.0
    %750 = vmatpush1.msra.mxu0 %v734
    %751 = vmatprep.subr.mxu0 0.0
    %752 = vmatpush1.msra.mxu0 %v733
    %753 = vmatprep.subr.mxu0 0.0
    %754 = vmatpush1.msra.mxu0 %v732
    %755 = vmatprep.subr.mxu0 0.0
    %756 = vmatpush1.msra.mxu0 %v731
    %757 = vmatprep.subr.mxu0 0.0
    %758 = vmatpush1.msra.mxu0 %v730
    %759 = vmatprep.subr.mxu0 0.0
    %760 = vmatpush1.msra.mxu0 %v729
    %761 = vmatprep.subr.mxu0 0.0
    %762 = vmatpush1.msra.mxu0 %v728
    %763 = vmatprep.subr.mxu0 0.0
    %764 = vmatpush1.msra.mxu0 %v727
    %765 = vmatprep.subr.mxu0 0.0
    %766 = vmatpush1.msra.mxu0 %v726
    %767 = vmatprep.subr.mxu0 0.0
    %768 = vmatpush1.msra.mxu0 %v725
    %769 = vmatprep.subr.mxu0 0.0
    %770 = vmatpush1.msra.mxu0 %v724
    %771 = vmatprep.subr.mxu0 0.0
    %772 = vmatpush1.msra.mxu0 %v723
    %773 = vmatprep.subr.mxu0 0.0
    %774 = vmatpush1.msra.mxu0 %v722
    %775 = vmatprep.subr.mxu0 0.0
    %776 = vmatpush1.msra.mxu0 %v721
    %777 = vmatprep.subr.mxu0 0.0
    %778 = vmatpush2.msra.mxu0 0.0
    %779 = vmatprep.subr.mxu0 0.0
    %780 = vmatpush2.msra.mxu0 0.0
    %781 = vmatprep.subr.mxu0 0.0
    %782 = vmatpush2.msra.mxu0 0.0
    %783 = vmatprep.subr.mxu0 0.0
    %784 = vmatpush2.msra.mxu0 0.0
    %785 = vmatprep.subr.mxu0 0.0
    %786 = vmatpush2.msra.mxu0 0.0
    %787 = vmatprep.subr.mxu0 0.0
    %788 = vmatpush2.msra.mxu0 0.0
    %789 = vmatprep.subr.mxu0 0.0
    %790 = vmatpush2.msra.mxu0 0.0
    %791 = vmatprep.subr.mxu0 0.0
    %792 = vmatpush2.msra.mxu0 0.0
    %793 = vmatprep.subr.mxu0 0.0
    %794 = vmatpush2.msra.mxu0 0.0
    %795 = vmatprep.subr.mxu0 0.0
    %796 = vmatpush2.msra.mxu0 0.0
    %797 = vmatprep.subr.mxu0 0.0
    %798 = vmatpush2.msra.mxu0 0.0
    %799 = vmatprep.subr.mxu0 0.0
    %800 = vmatpush2.msra.mxu0 0.0
    %801 = vmatprep.subr.mxu0 0.0
    %802 = vmatpush2.msra.mxu0 0.0
    %803 = vmatprep.subr.mxu0 0.0
    %804 = vmatpush2.msra.mxu0 0.0
    %805 = vmatprep.subr.mxu0 0.0
    %806 = vmatpush2.msra.mxu0 0.0
    %807 = vmatprep.subr.mxu0 0.0
    %808 = vmatpush2.msra.mxu0 0.0
    %809 = vmatprep.mubr.f32.mxu0 0.0
    %810 = vmatmul.mubr.f32.gmra.mxu0 %v719
    %v811 = vpop.f32.mrf.mxu0
    %v812 = vadd.f32 %v743, %v811
    %v813 = vpop.f32.mrf.mxu0
    %814 = vdwg.mxu0
    %vm815 = vcmp.gt.f32.partialorder %v812, 0.0
    %v816 = vmul.f32 %v812, 0.01
    %v817 = vsel %vm815, %v812, %v816
    %s818 = scalar_lea.vmem [#allocation2], 1024
    %v819 = vld [vmem:[%s818] sm:$0xff]
    %v820 = vld [vmem:[%s818 + $0x8] sm:$0xff]
    %v821 = vld [vmem:[%s818 + $0x10] sm:$0xff]
    %v822 = vld [vmem:[%s818 + $0x18] sm:$0xff]
    %v823 = vld [vmem:[%s818 + $0x20] sm:$0xff]
    %v824 = vld [vmem:[%s818 + $0x28] sm:$0xff]
    %v825 = vld [vmem:[%s818 + $0x30] sm:$0xff]
    %v826 = vld [vmem:[%s818 + $0x38] sm:$0xff]
    %v827 = vld [vmem:[%s818 + $0x40] sm:$0xff]
    %v828 = vld [vmem:[%s818 + $0x48] sm:$0xff]
    %v829 = vld [vmem:[%s818 + $0x50] sm:$0xff]
    %v830 = vld [vmem:[%s818 + $0x58] sm:$0xff]
    %v831 = vld [vmem:[%s818 + $0x60] sm:$0xff]
    %v832 = vld [vmem:[%s818 + $0x68] sm:$0xff]
    %v833 = vld [vmem:[%s818 + $0x70] sm:$0xff]
    %v834 = vld [vmem:[%s818 + $0x78] sm:$0xff]
    %s835 = scalar_lea.vmem %s2, 8
    %v836 = vld [vmem:[%s835] sm:$0x1]
    %v838 = vlaneseq
    %v839 = vshrl.u32 %v838, 7
    %v840 = vsub.s32 0, %v839
    %v841 = vrot.slane %v836, %v840
    %843 = vmatprep.subr.mxu0 0.0
    %844 = vmatpush1.msra.mxu0 %v834
    %845 = vmatprep.subr.mxu0 0.0
    %846 = vmatpush1.msra.mxu0 %v833
    %847 = vmatprep.subr.mxu0 0.0
    %848 = vmatpush1.msra.mxu0 %v832
    %849 = vmatprep.subr.mxu0 0.0
    %850 = vmatpush1.msra.mxu0 %v831
    %851 = vmatprep.subr.mxu0 0.0
    %852 = vmatpush1.msra.mxu0 %v830
    %853 = vmatprep.subr.mxu0 0.0
    %854 = vmatpush1.msra.mxu0 %v829
    %855 = vmatprep.subr.mxu0 0.0
    %856 = vmatpush1.msra.mxu0 %v828
    %857 = vmatprep.subr.mxu0 0.0
    %858 = vmatpush1.msra.mxu0 %v827
    %859 = vmatprep.subr.mxu0 0.0
    %860 = vmatpush1.msra.mxu0 %v826
    %861 = vmatprep.subr.mxu0 0.0
    %862 = vmatpush1.msra.mxu0 %v825
    %863 = vmatprep.subr.mxu0 0.0
    %864 = vmatpush1.msra.mxu0 %v824
    %865 = vmatprep.subr.mxu0 0.0
    %866 = vmatpush1.msra.mxu0 %v823
    %867 = vmatprep.subr.mxu0 0.0
    %868 = vmatpush1.msra.mxu0 %v822
    %869 = vmatprep.subr.mxu0 0.0
    %870 = vmatpush1.msra.mxu0 %v821
    %871 = vmatprep.subr.mxu0 0.0
    %872 = vmatpush1.msra.mxu0 %v820
    %873 = vmatprep.subr.mxu0 0.0
    %874 = vmatpush1.msra.mxu0 %v819
    %875 = vmatprep.subr.mxu0 0.0
    %876 = vmatpush2.msra.mxu0 0.0
    %877 = vmatprep.subr.mxu0 0.0
    %878 = vmatpush2.msra.mxu0 0.0
    %879 = vmatprep.subr.mxu0 0.0
    %880 = vmatpush2.msra.mxu0 0.0
    %881 = vmatprep.subr.mxu0 0.0
    %882 = vmatpush2.msra.mxu0 0.0
    %883 = vmatprep.subr.mxu0 0.0
    %884 = vmatpush2.msra.mxu0 0.0
    %885 = vmatprep.subr.mxu0 0.0
    %886 = vmatpush2.msra.mxu0 0.0
    %887 = vmatprep.subr.mxu0 0.0
    %888 = vmatpush2.msra.mxu0 0.0
    %889 = vmatprep.subr.mxu0 0.0
    %890 = vmatpush2.msra.mxu0 0.0
    %891 = vmatprep.subr.mxu0 0.0
    %892 = vmatpush2.msra.mxu0 0.0
    %893 = vmatprep.subr.mxu0 0.0
    %894 = vmatpush2.msra.mxu0 0.0
    %895 = vmatprep.subr.mxu0 0.0
    %896 = vmatpush2.msra.mxu0 0.0
    %897 = vmatprep.subr.mxu0 0.0
    %898 = vmatpush2.msra.mxu0 0.0
    %899 = vmatprep.subr.mxu0 0.0
    %900 = vmatpush2.msra.mxu0 0.0
    %901 = vmatprep.subr.mxu0 0.0
    %902 = vmatpush2.msra.mxu0 0.0
    %903 = vmatprep.subr.mxu0 0.0
    %904 = vmatpush2.msra.mxu0 0.0
    %905 = vmatprep.subr.mxu0 0.0
    %906 = vmatpush2.msra.mxu0 0.0
    %907 = vmatprep.mubr.f32.mxu0 0.0
    %908 = vmatmul.mubr.f32.gmra.mxu0 %v817
    %v909 = vpop.f32.mrf.mxu0
    %v910 = vadd.f32 %v841, %v909
    %v911 = vpop.f32.mrf.mxu0
    %912 = vdwg.mxu0
    %913 = vst [vmem:[%s3] sm:$0xff] %v910
    %914 = vst [vmem:[%s3 + $0x8] sm:$0xff] %v523
    %915 = vst [vmem:[%s3 + $0x10] sm:$0xff] %v519
    %916 = vst [vmem:[%s3 + $0x18] sm:$0xff] %v521
    // Predicated region
    $region18: #{vae_forward.1} parent=1 // pred_check
      _
    $region19: #{vae_forward.1} parent=1 // pred_check_branch
      %918 = sbr.rel (0) target = $region21
    $region20: #{vae_forward.1} parent=1 // pred_region
      _
    $region21: #{vae_forward.1} parent=1 // pred_fallthru
      _
    // Predicated region
    $region22: #{vae_forward.1} parent=1 // pred_check
      _
    $region23: #{vae_forward.1} parent=1 // pred_check_branch
      %920 = sbr.rel (0) target = $region25
    $region24: #{vae_forward.1} parent=1 // pred_region
      _
    $region25: #{vae_forward.1} parent=1 // pred_fallthru
      _
    %921 = vsyncpa [#allocation3], 1

</llo_original>
